<compile_context>
chip_gen: v6e
topology: v6e:2x2x1
jax: 0.10.0
libtpu: 0.0.40
codegen_flags: <defaults>
</compile_context>

<pallas_src>
import functools

import jax
import jax.numpy as jnp
from jax.experimental import pallas as pl
from jax.experimental.pallas import tpu as pltpu

_BF16 = jnp.bfloat16
_F32 = jnp.float32
_VMEM_LIMIT = 32 * 1024 * 1024


# ----------------------------------------------------------------------------
# kernels
# ----------------------------------------------------------------------------
def _xw_kernel(x_ref, w1_ref, xw_ref):
    """xw_tile = x_tile @ W1 (computed once; hoisted out of the adj loop)."""
    xw_ref[...] = jnp.dot(x_ref[...], w1_ref[...],
                          preferred_element_type=_F32).astype(xw_ref.dtype)


def _gcn1_kernel(adj_ref, xw_ref, w23_ref, t_ref, acc_ref):
    """acc += adj_tile @ xw_tile ; at last K step: t = relu(acc) @ [W2 | W3]."""
    k = pl.program_id(1)

    @pl.when(k == 0)
    def _():
        acc_ref[...] = jnp.zeros_like(acc_ref)

    acc_ref[...] += jnp.dot(adj_ref[...], xw_ref[...],
                            preferred_element_type=_F32)

    @pl.when(k == pl.num_programs(1) - 1)
    def _():
        hidden = jnp.maximum(acc_ref[...], 0.0).astype(_BF16)
        t_ref[...] = jnp.dot(hidden, w23_ref[...],
                             preferred_element_type=_F32).astype(t_ref.dtype)


def _gcn2_kernel(adj_ref, t_ref, noise_ref, z_ref, acc_ref, *, h2):
    """acc += adj_tile @ t_tile ; last K step: z = relu(noise*exp(logstd)+mean)."""
    k = pl.program_id(1)

    @pl.when(k == 0)
    def _():
        acc_ref[...] = jnp.zeros_like(acc_ref)

    acc_ref[...] += jnp.dot(adj_ref[...], t_ref[...],
                            preferred_element_type=_F32)

    @pl.when(k == pl.num_programs(1) - 1)
    def _():
        ml = acc_ref[...]                     # (TM, 2*H2) fused [mean | logstd]
        mean = ml[:, :h2]
        logstd = ml[:, h2:]
        z = jnp.maximum(noise_ref[...] * jnp.exp(logstd) + mean, 0.0)
        z_ref[...] = z.astype(z_ref.dtype)


def _decode_kernel(zr_ref, zc_ref, out_ref, *, tm, tn, num_user, n_real):
    """out_block = sigmoid(zu_r @ za_c.T + za_r @ zu_c.T).

    User/assertion split done in-kernel with iota masks (padded rows masked
    out of both halves).  Both matmuls contract over H2 ("NT" dot_generals),
    so there is no N x N transpose on the XLU.
    """
    i = pl.program_id(0)
    j = pl.program_id(1)
    h2 = zr_ref.shape[1]
    zr = zr_ref[...]
    zc = zc_ref[...]
    dt = zr.dtype
    rows = i * tm + jax.lax.broadcasted_iota(jnp.int32, (tm, h2), 0)
    cols = j * tn + jax.lax.broadcasted_iota(jnp.int32, (tn, h2), 0)
    zu_r = zr * (rows < num_user).astype(dt)
    za_r = zr * ((rows >= num_user) & (rows < n_real)).astype(dt)
    zu_c = zc * (cols < num_user).astype(dt)
    za_c = zc * ((cols >= num_user) & (cols < n_real)).astype(dt)
    nt = (((1,), (1,)), ((), ()))             # contract over H2
    s = jax.lax.dot_general(zu_r, za_c, nt, preferred_element_type=_F32)
    s = s + jax.lax.dot_general(za_r, zu_c, nt, preferred_element_type=_F32)
    out_ref[...] = jax.nn.sigmoid(s)


# ----------------------------------------------------------------------------
# wrapper
# ----------------------------------------------------------------------------
def _round_up(a, b):
    return (a + b - 1) // b * b


def _plan_tiling(n):
    """Row / col / K tile size.  K-tiling keeps the tile at 256 regardless of
    N, so per-step VMEM stays ~1.5 MiB (fits the default scoped limit on
    v5e/v6e/v7x) and the 'parallel' row axis has >=2 steps once N > 256 so
    both v7x TensorCores get work."""
    n8 = _round_up(max(n, 8), 8)
    if n8 <= 256:
        return n8, n8
    tile = 256
    return _round_up(n8, tile), tile


def vgae_forward(adj, x, w1, w2, w3, noise, *, num_user):
    n = adj.shape[0]
    d_in = x.shape[1]
    h1 = w1.shape[1]
    h2 = w2.shape[1]
    np_, t_sz = _plan_tiling(n)
    pad = np_ - n
    nsteps = np_ // t_sz

    adj_b = jnp.pad(adj, ((0, pad), (0, pad))).astype(_BF16)   # 0/1 -> exact
    x_b = jnp.pad(x, ((0, pad), (0, 0))).astype(_BF16)
    noise_p = jnp.pad(noise, ((0, pad), (0, 0))).astype(_F32)
    w1_b = w1.astype(_BF16)
    w23_b = jnp.concatenate([w2, w3], axis=1).astype(_BF16)    # fused mean|logstd

    row_par = pltpu.CompilerParams(
        dimension_semantics=("parallel",), vmem_limit_bytes=_VMEM_LIMIT)
    row_k = pltpu.CompilerParams(
        dimension_semantics=("parallel", "arbitrary"),
        vmem_limit_bytes=_VMEM_LIMIT)
    row_col = pltpu.CompilerParams(
        dimension_semantics=("parallel", "parallel"),
        vmem_limit_bytes=_VMEM_LIMIT)

    # --- stage 0: xw = x @ W1 (once; not per adj row tile) ------------------
    xw = pl.pallas_call(
        _xw_kernel,
        out_shape=jax.ShapeDtypeStruct((np_, h1), _BF16),
        grid_spec=pltpu.PrefetchScalarGridSpec(
            num_scalar_prefetch=0, grid=(nsteps,),
            in_specs=[pl.BlockSpec((t_sz, d_in), lambda i: (i, 0)),
                      pl.BlockSpec((d_in, h1), lambda i: (0, 0))],
            out_specs=pl.BlockSpec((t_sz, h1), lambda i: (i, 0)),
        ),
        compiler_params=row_par,
    )(x_b, w1_b)

    # --- stage 1: t = relu(adj @ xw) @ [W2 | W3]  (K-tiled accumulation) ----
    t = pl.pallas_call(
        _gcn1_kernel,
        out_shape=jax.ShapeDtypeStruct((np_, 2 * h2), _BF16),
        grid_spec=pltpu.PrefetchScalarGridSpec(
            num_scalar_prefetch=0, grid=(nsteps, nsteps),
            in_specs=[
                pl.BlockSpec((t_sz, t_sz), lambda i, k: (i, k)),      # adj
                pl.BlockSpec((t_sz, h1), lambda i, k: (k, 0)),        # xw
                pl.BlockSpec((h1, 2 * h2), lambda i, k: (0, 0)),      # W23
            ],
            out_specs=pl.BlockSpec((t_sz, 2 * h2), lambda i, k: (i, 0)),
            scratch_shapes=[pltpu.VMEM((t_sz, h1), _F32)],
        ),
        compiler_params=row_k,
    )(adj_b, xw, w23_b)

    # --- stage 2: [mean|logstd] = adj @ t ; z = relu(noise*exp(logstd)+mean)
    z = pl.pallas_call(
        functools.partial(_gcn2_kernel, h2=h2),
        out_shape=jax.ShapeDtypeStruct((np_, h2), _BF16),
        grid_spec=pltpu.PrefetchScalarGridSpec(
            num_scalar_prefetch=0, grid=(nsteps, nsteps),
            in_specs=[
                pl.BlockSpec((t_sz, t_sz), lambda i, k: (i, k)),      # adj
                pl.BlockSpec((t_sz, 2 * h2), lambda i, k: (k, 0)),    # t
                pl.BlockSpec((t_sz, h2), lambda i, k: (i, 0)),        # noise
            ],
            out_specs=pl.BlockSpec((t_sz, h2), lambda i, k: (i, 0)),
            scratch_shapes=[pltpu.VMEM((t_sz, 2 * h2), _F32)],
        ),
        compiler_params=row_k,
    )(adj_b, t, noise_p)

    # --- stage 3: decode, tiled in both output dims --------------------------
    out_p = pl.pallas_call(
        functools.partial(_decode_kernel, tm=t_sz, tn=t_sz,
                          num_user=num_user, n_real=n),
        out_shape=jax.ShapeDtypeStruct((np_, np_), _F32),
        grid_spec=pltpu.PrefetchScalarGridSpec(
            num_scalar_prefetch=0, grid=(nsteps, nsteps),
            in_specs=[
                pl.BlockSpec((t_sz, h2), lambda i, j: (i, 0)),        # z rows
                pl.BlockSpec((t_sz, h2), lambda i, j: (j, 0)),        # z cols
            ],
            out_specs=pl.BlockSpec((t_sz, t_sz), lambda i, j: (i, j)),
        ),
        compiler_params=row_col,
    )(z, z)

    return out_p[:n, :n]


# ----------------------------------------------------------------------------
# pure-JAX reference (same bf16-matmul / f32-accumulate recipe as the kernels)
# ----------------------------------------------------------------------------
def ref_forward(adj, x, w1, w2, w3, noise, *, num_user):
    n = adj.shape[0]
    h2 = w2.shape[1]
    w23 = jnp.concatenate([w2, w3], axis=1).astype(_BF16)
    adj_b = adj.astype(_BF16)
    xw = jnp.dot(x.astype(_BF16), w1.astype(_BF16),
                 preferred_element_type=_F32).astype(_BF16)
    hidden = jnp.maximum(jnp.dot(adj_b, xw, preferred_element_type=_F32), 0.0)
    t = jnp.dot(hidden.astype(_BF16), w23,
                preferred_element_type=_F32).astype(_BF16)
    ml = jnp.dot(adj_b, t, preferred_element_type=_F32)
    mean, logstd = ml[:, :h2], ml[:, h2:]
    z = jnp.maximum(noise * jnp.exp(logstd) + mean, 0.0).astype(_BF16)
    rows = jnp.arange(n)[:, None]
    zu = z * (rows < num_user).astype(_BF16)
    za = z * (rows >= num_user).astype(_BF16)
    nt = (((1,), (1,)), ((), ()))
    s = jax.lax.dot_general(zu, za, nt, preferred_element_type=_F32)
    s = s + jax.lax.dot_general(za, zu, nt, preferred_element_type=_F32)
    return jax.nn.sigmoid(s)


def glorot_init(key, input_dim, output_dim):
    init_range = jnp.sqrt(6.0 / (input_dim + output_dim))
    return jax.random.uniform(key, (input_dim, output_dim), dtype=jnp.float32,
                              minval=-init_range, maxval=init_range)


if __name__ == "__main__":
    num_user = 6
    num_assertion = 10
    N = num_user + num_assertion          # 16 nodes (toy; kernels tile at scale)
    input_dim = 32
    hidden1_dim = 32
    hidden2_dim = 16

    key = jax.random.PRNGKey(0)
    k_adj, k_x, k_w1, k_w2, k_w3, k_noise = jax.random.split(key, 6)

    a = jax.random.uniform(k_adj, (N, N), dtype=jnp.float32)
    adj = ((a + a.T) > 1.0).astype(jnp.float32) + jnp.eye(N, dtype=jnp.float32)
    x = jax.random.normal(k_x, (N, input_dim), dtype=jnp.float32)
    w1 = glorot_init(k_w1, input_dim, hidden1_dim)
    w2 = glorot_init(k_w2, hidden1_dim, hidden2_dim)
    w3 = glorot_init(k_w3, hidden1_dim, hidden2_dim)
    # TODO(synk): torch.randn inside encode() has no in-kernel torch-RNG
    # equivalent; gaussian noise is supplied as an explicit input instead.
    noise = jax.random.normal(k_noise, (N, hidden2_dim), dtype=jnp.float32)

    out = vgae_forward(adj, x, w1, w2, w3, noise, num_user=num_user)
    out = jax.block_until_ready(out)

    ref = ref_forward(adj, x, w1, w2, w3, noise, num_user=num_user)

    assert out.shape == (N, N)
    err = float(jnp.max(jnp.abs(out - ref)))
    assert jnp.allclose(out, ref, atol=2e-3, rtol=2e-3), err
    print("KERNEL_OK")
</pallas_src>

<mosaic_0001>
module attributes {stable_mosaic.version = 11 : i64} {
  func.func @_xw_kernel(%arg0: i32, %arg1: memref<16x32xbf16, #tpu.memory_space<vmem>>, %arg2: memref<32x32xbf16, #tpu.memory_space<vmem>>, %arg3: memref<16x32xbf16, #tpu.memory_space<vmem>>) attributes {dimension_semantics = [#tpu.dimension_semantics<parallel>], iteration_bounds = array<i64: 1>, scalar_prefetch = 0 : i64, scratch_operands = 0 : i64, tpu.core_type = #tpu.core_type<tc>, window_params = [{transform_indices = @transform_0, window_bounds = array<i64: 16, 32>}, {pipeline_mode = #tpu.pipeline_mode<synchronous>, transform_indices = @transform_1, window_bounds = array<i64: 32, 32>}, {transform_indices = @transform_2, window_bounds = array<i64: 16, 32>}]} {
    %c0 = arith.constant 0 : index
    %c0_0 = arith.constant 0 : index
    %0 = vector.load %arg1[%c0, %c0_0] : memref<16x32xbf16, #tpu.memory_space<vmem>>, vector<16x32xbf16>
    %c0_1 = arith.constant 0 : index
    %c0_2 = arith.constant 0 : index
    %1 = vector.load %arg2[%c0_1, %c0_2] : memref<32x32xbf16, #tpu.memory_space<vmem>>, vector<32x32xbf16>
    %cst = arith.constant dense<0.000000e+00> : vector<16x32xf32>
    %2 = tpu.matmul %0, %1, %cst {dimension_numbers = #tpu.dot_dimension_numbers<[1], [0], [0], [1], [0, 0, 1, 1], [], []>} : vector<16x32xbf16>, vector<32x32xbf16>, vector<16x32xf32> -> vector<16x32xf32>
    %3 = arith.truncf %2 : vector<16x32xf32> to vector<16x32xbf16>
    %c0_3 = arith.constant 0 : index
    %c0_4 = arith.constant 0 : index
    %4 = vector.load %arg3[%c0_3, %c0_4] : memref<16x32xbf16, #tpu.memory_space<vmem>>, vector<16x32xbf16>
    tpu.vector_store %arg3[%c0_3, %c0_4], %3 {strides = array<i32>} : memref<16x32xbf16, #tpu.memory_space<vmem>>, vector<16x32xbf16>,
    return
  }
  func.func @transform_0(%arg0: i32) -> (i32, i32) {
    %c0_i32 = arith.constant 0 : i32
    %c0_i32_0 = arith.constant 0 : i32
    return %arg0, %c0_i32 : i32, i32
  }
  func.func @transform_1(%arg0: i32) -> (i32, i32) {
    %c0_i32 = arith.constant 0 : i32
    %c0_i32_0 = arith.constant 0 : i32
    %c0_i32_1 = arith.constant 0 : i32
    return %c0_i32, %c0_i32_0 : i32, i32
  }
  func.func @transform_2(%arg0: i32) -> (i32, i32) {
    %c0_i32 = arith.constant 0 : i32
    %c0_i32_0 = arith.constant 0 : i32
    return %arg0, %c0_i32 : i32, i32
  }
}

</mosaic_0001>

<llo_original>
// kernel: tpu_custom_call.1
$region0: #{tpu_custom_call.1}
  #allocation0 [shape = 'u32[]', space=smem, size = 0x4, offset = 0x4, fixed_abs, tag = 'smem constant byte address 0x4 - core index']
  #allocation1 [shape = 'u32[144,128]{1,0:T(1,128)}', space=vmem, size = 0x12000, scoped, tag = 'internal scratch']
  %s0 = inlined_call_operand.hbm [shape: bf16[16,32], index: 0, kind: input, shape index: {}]
  %s1 = inlined_call_operand.hbm [shape: bf16[32,32], index: 1, kind: input, shape index: {}]
  %s2 = inlined_call_operand.hbm [shape: bf16[16,32], index: 2, kind: output, shape index: {}]
  %s3 = sld [smem:[#allocation0]]
  $region26: #{tpu_custom_call.1} parent=0
    _
  %s5 = ssub.s32 1, %s3
  %s6 = scalar_select 0, %s5, %s3
  $region1: #{tpu_custom_call.1} parent=0
    #allocation2 [shape = 'u8[4096]{0}', space=vmem, size = 0x1000, scoped, tag = 'input window, operand 0, single buffered']
    #allocation3 [shape = 's32[1]{0}', space=sflag, size = 0x4, scoped, tag = 'scoped memory for tpu_custom_call.1']
    #allocation4 [shape = 's32[1]{0}', space=sflag, size = 0x4, scoped, tag = 'scoped memory for tpu_custom_call.1']
    #allocation5 [shape = 'u8[8192]{0}', space=vmem, size = 0x2000, scoped, tag = 'input window, operand 1, single buffered']
    #allocation6 [shape = 's32[1]{0}', space=sflag, size = 0x4, scoped, tag = 'scoped memory for tpu_custom_call.1']
    #allocation7 [shape = 'u8[4096]{0}', space=vmem, size = 0x1000, scoped, tag = 'output window, operand 0, single buffered']
    %7 = vsyncpa [#allocation3], 0
    %8 = vsyncpa [#allocation6], 0
    %9 = vsyncpa [#allocation4], 0
    // Predicated region
    $region2: #{tpu_custom_call.1} parent=1 // pred_check
      _
    $region3: #{tpu_custom_call.1} parent=1 // pred_check_branch
      %11 = sbr.rel (0) target = $region5
    $region4: #{tpu_custom_call.1} parent=1 // pred_region
      %s13 = ssub.s32 128, 128
      %14 = vsyncadd [#allocation3], %s13
      %s15 = sshll.u32 [#allocation2], 4
      %s16 = int_to_ptr.vmem [resolvable:$true] %s15
      %21 = dma.hbm_to_vmem [thread:$0]  %s0, 128, %s16, [#allocation3], 64, 64, 4
    $region5: #{tpu_custom_call.1} parent=1 // pred_fallthru
      _
    // Predicated region
    $region6: #{tpu_custom_call.1} parent=1 // pred_check
      _
    $region7: #{tpu_custom_call.1} parent=1 // pred_check_branch
      %23 = sbr.rel (0) target = $region9
    $region8: #{tpu_custom_call.1} parent=1 // pred_region
      %s25 = ssub.s32 256, 256
      %26 = vsyncadd [#allocation6], %s25
      %s27 = sshll.u32 [#allocation5], 4
      %s28 = int_to_ptr.vmem [resolvable:$true] %s27
      %33 = dma.hbm_to_vmem [thread:$0]  %s1, 256, %s28, [#allocation6], 64, 64, 4
    $region9: #{tpu_custom_call.1} parent=1 // pred_fallthru
      _
    // Predicated region
    $region10: #{tpu_custom_call.1} parent=1 // pred_check
      _
    $region11: #{tpu_custom_call.1} parent=1 // pred_check_branch
      %35 = sbr.rel (0) target = $region13
    $region12: #{tpu_custom_call.1} parent=1 // pred_region
      %36 = dma.done [#allocation3], 128
    $region13: #{tpu_custom_call.1} parent=1 // pred_fallthru
      _
    // Predicated region
    $region14: #{tpu_custom_call.1} parent=1 // pred_check
      _
    $region15: #{tpu_custom_call.1} parent=1 // pred_check_branch
      %38 = sbr.rel (0) target = $region17
    $region16: #{tpu_custom_call.1} parent=1 // pred_region
      %39 = dma.done [#allocation6], 256
    $region17: #{tpu_custom_call.1} parent=1 // pred_fallthru
      _
    %v41 = vld [vmem:[#allocation2] sm:$0xf]
    %v42 = vld [vmem:[#allocation2 + $0x4] sm:$0xf]
    %v43 = vld [vmem:[#allocation5] sm:$0xf]
    %v44 = vld [vmem:[#allocation5 + $0x4] sm:$0xf]
    %v45 = vld [vmem:[#allocation5 + $0x8] sm:$0xf]
    %v46 = vld [vmem:[#allocation5 + $0xc] sm:$0xf]
    %v49 = vunpack.c.l.b16 %v41
    %v50 = vunpack.c.l.b16 %v42
    %v51 = vpack.c.b16 %v50, %v49
    %v56 = vunpack.c.l.b16 %v43
    %v57 = vunpack.c.l.b16 %v44
    %v58 = vunpack.c.l.b16 %v45
    %v59 = vunpack.c.l.b16 %v46
    %v60 = vpack.c.b16 %v57, %v56
    %v61 = vpack.c.b16 %v59, %v58
    %vm64 = vcmask 261120
    %v66 = vsel %vm64, %v51, 0
    %68 = vmatprep.subr.bf16.mxu0 0
    %69 = vmatpush1.bf16.msra.mxu0 0
    %70 = vmatprep.subr.bf16.mxu0 0
    %71 = vmatpush1.bf16.msra.mxu0 0
    %72 = vmatprep.subr.bf16.mxu0 0
    %73 = vmatpush1.bf16.msra.mxu0 0
    %74 = vmatprep.subr.bf16.mxu0 0
    %75 = vmatpush1.bf16.msra.mxu0 0
    %76 = vmatprep.subr.bf16.mxu0 0
    %77 = vmatpush1.bf16.msra.mxu0 0
    %78 = vmatprep.subr.bf16.mxu0 0
    %79 = vmatpush1.bf16.msra.mxu0 0
    %80 = vmatprep.subr.bf16.mxu0 0
    %81 = vmatpush1.bf16.msra.mxu0 %v61
    %82 = vmatprep.subr.bf16.mxu0 0
    %83 = vmatpush1.bf16.msra.mxu0 %v60
    %84 = vmatprep.subr.bf16.mxu0 0
    %85 = vmatpush2.bf16.msra.mxu0 0
    %86 = vmatprep.subr.bf16.mxu0 0
    %87 = vmatpush2.bf16.msra.mxu0 0
    %88 = vmatprep.subr.bf16.mxu0 0
    %89 = vmatpush2.bf16.msra.mxu0 0
    %90 = vmatprep.subr.bf16.mxu0 0
    %91 = vmatpush2.bf16.msra.mxu0 0
    %92 = vmatprep.subr.bf16.mxu0 0
    %93 = vmatpush2.bf16.msra.mxu0 0
    %94 = vmatprep.subr.bf16.mxu0 0
    %95 = vmatpush2.bf16.msra.mxu0 0
    %96 = vmatprep.subr.bf16.mxu0 0
    %97 = vmatpush2.bf16.msra.mxu0 0
    %98 = vmatprep.subr.bf16.mxu0 0
    %99 = vmatpush2.bf16.msra.mxu0 0
    %100 = vmatprep.mubr.bf16.mxu0 0
    %101 = vmatmul.mubr.bf16.gmra.mxu0 %v66
    %v102 = vpop.f32.mrf.mxu0
    %v103 = vadd.f32 0.0, %v102
    %v104 = vpop.f32.mrf.mxu0
    %v105 = vpop.f32.mrf.mxu0
    %v106 = vadd.f32 0.0, %v105
    %v107 = vpop.f32.mrf.mxu0
    %108 = vdwg.mxu0
    %v109 = vpack.c.bf16 %v106, %v103
    %v111 = vunpack.c.l.b16 %v109
    %v112 = vunpack.c.h.b16 %v109
    %v113 = vpack.c.b16 %v111, %v111
    %v114 = vpack.c.b16 %v112, %v112
    %vm117 = vcmask 257024
    %118 = vst.msk [vmem:[#allocation7] sm:$0xf] %vm117, %v113
    %119 = vst.msk [vmem:[#allocation7 + $0x4] sm:$0xf] %vm117, %v114
    // Predicated region
    $region18: #{tpu_custom_call.1} parent=1 // pred_check
      _
    $region19: #{tpu_custom_call.1} parent=1 // pred_check_branch
      %121 = sbr.rel (0) target = $region21
    $region20: #{tpu_custom_call.1} parent=1 // pred_region
      %s123 = ssub.s32 128, 128
      %124 = vsyncadd [#allocation4], %s123
      %s125 = sshll.u32 [#allocation7], 4
      %s126 = int_to_ptr.vmem [resolvable:$true] %s125
      %131 = dma.vmem_to_hbm [thread:$0]  %s126, 128, %s2, [#allocation4], 64, 64, 4
    $region21: #{tpu_custom_call.1} parent=1 // pred_fallthru
      _
    // Predicated region
    $region22: #{tpu_custom_call.1} parent=1 // pred_check
      _
    $region23: #{tpu_custom_call.1} parent=1 // pred_check_branch
      %133 = sbr.rel (0) target = $region25
    $region24: #{tpu_custom_call.1} parent=1 // pred_region
      %134 = dma.done [#allocation4], 128
    $region25: #{tpu_custom_call.1} parent=1 // pred_fallthru
      _
    %135 = vsyncpa [#allocation3], 1
    %136 = vsyncpa [#allocation6], 1
    %137 = vsyncpa [#allocation4], 1

</llo_original>
